<compile_context>
chip_gen: v7x
topology: tpu7x:2x2x1
jax: 0.10.0
libtpu: 0.0.40
codegen_flags: <defaults>
</compile_context>

<pallas_src>
import jax
import jax.numpy as jnp
from jax.experimental import pallas as pl
from jax.experimental.pallas import tpu as pltpu


def _fraud_mlp_kernel(x_ref,
                      w1_ref, b1_ref,
                      w2_ref, b2_ref,
                      w3_ref, b3_ref,
                      w4_ref, b4_ref,
                      o_ref):
    # x_ref: (F, tb) bf16, batch on the lane axis.
    x = x_ref[...]

    # fc1 + relu   (dropout -> identity at inference)
    h = jnp.dot(w1_ref[...], x, preferred_element_type=jnp.float32) + b1_ref[...]
    h = jnp.maximum(h, 0.0)

    # fc2 + relu   (dropout -> identity at inference)
    h = jnp.dot(w2_ref[...], h.astype(jnp.bfloat16),
                preferred_element_type=jnp.float32) + b2_ref[...]
    h = jnp.maximum(h, 0.0)

    # fc3 + relu
    h = jnp.dot(w3_ref[...], h.astype(jnp.bfloat16),
                preferred_element_type=jnp.float32) + b3_ref[...]
    h = jnp.maximum(h, 0.0)

    # fc4 (logits, no activation) -> (out_dim, tb): lane-dense store.
    o_ref[...] = (jnp.dot(w4_ref[...], h.astype(jnp.bfloat16),
                          preferred_element_type=jnp.float32)
                  + b4_ref[...]).astype(o_ref.dtype)


def _round_up(n, m):
    return (n + m - 1) // m * m


def _choose_tile(batch, tile_b):
    # Tiny batches: a single full-extent block (lane dim == array dim is legal).
    if batch <= 256:
        return batch
    # Otherwise: lane dim must be a multiple of 128; keep >= 2 grid steps so
    # dimension_semantics=("parallel",) can shard across v7x's two TensorCores.
    half = _round_up(pl.cdiv(batch, 2), 128)
    return max(128, min(_round_up(tile_b, 128), half))


def fraud_nn_forward(x, params, *, tile_b=2048):
    """Fused FraudNN forward.  x: (B, 29) f32 -> (B, 2) f32 logits."""
    B, F = x.shape
    out_dim = params["w4"].shape[0]

    # Batch on the lane (last) axis; bf16 matmul operands (halves the x DMA).
    xT = x.T.astype(jnp.bfloat16)                      # (F, B)

    tb = _choose_tile(B, tile_b)
    grid = (pl.cdiv(B, tb),)

    batch_map = lambda i: (0, i)     # x / out tiles march along the lane axis
    const_map = lambda i: (0, 0)     # weights & biases stay VMEM-resident

    weight_args, weight_specs = [], []
    for idx in range(1, 5):
        w = params[f"w{idx}"].astype(jnp.bfloat16)     # (out, in), bf16 operands
        b = params[f"b{idx}"]                          # (out, 1),  f32 bias
        weight_args += [w, b]
        weight_specs += [pl.BlockSpec(w.shape, const_map),
                         pl.BlockSpec(b.shape, const_map)]

    flops = 2 * B * sum(
        params[f"w{i}"].shape[0] * params[f"w{i}"].shape[1] for i in range(1, 5))
    weight_bytes = sum(int(a.size) * a.dtype.itemsize for a in weight_args)
    bytes_accessed = int(xT.size) * 2 + B * out_dim * 4 + weight_bytes

    outT = pl.pallas_call(
        _fraud_mlp_kernel,
        out_shape=jax.ShapeDtypeStruct((out_dim, B), jnp.float32),
        grid=grid,
        in_specs=[pl.BlockSpec((F, tb), batch_map)] + weight_specs,
        out_specs=pl.BlockSpec((out_dim, tb), batch_map),
        compiler_params=pltpu.CompilerParams(
            dimension_semantics=("parallel",),
            vmem_limit_bytes=32 * 1024 * 1024),
        cost_estimate=pl.CostEstimate(
            flops=flops, transcendentals=0, bytes_accessed=bytes_accessed),
    )(xT, *weight_args)

    return outT.T                                      # (B, out_dim)


def init_params(key, input_size=29):
    """Init matching PyTorch nn.Linear default (uniform +-1/sqrt(fan_in)).

    Weights are kept in PyTorch's (out_features, in_features) layout; biases
    are stored as (out_features, 1) so they broadcast along lanes in-kernel.
    """
    dims = [(input_size, 64), (64, 32), (32, 16), (16, 2)]
    params = {}
    for idx, (fan_in, fan_out) in enumerate(dims, start=1):
        key, kw, kb = jax.random.split(key, 3)
        bound = 1.0 / jnp.sqrt(jnp.float32(fan_in))
        params[f"w{idx}"] = jax.random.uniform(
            kw, (fan_out, fan_in), jnp.float32, -bound, bound)
        params[f"b{idx}"] = jax.random.uniform(
            kb, (fan_out, 1), jnp.float32, -bound, bound)
    return params


def _reference_forward(x, params):
    """Pure-JAX f32 reference (matches the PyTorch module at inference)."""
    h = jnp.maximum(x @ params["w1"].T + params["b1"].T, 0.0)
    h = jnp.maximum(h @ params["w2"].T + params["b2"].T, 0.0)
    h = jnp.maximum(h @ params["w3"].T + params["b3"].T, 0.0)
    return h @ params["w4"].T + params["b4"].T


if __name__ == "__main__":
    key = jax.random.PRNGKey(0)
    key, kx = jax.random.split(key)

    input_size = 29
    params = init_params(key, input_size=input_size)

    # Small shape (single full-extent block).
    batch = 8
    x = jax.random.normal(kx, (batch, input_size), jnp.float32)
    out = jax.block_until_ready(fraud_nn_forward(x, params))
    ref = _reference_forward(x, params)
    assert out.shape == (batch, 2)
    # bf16 matmul operands -> loose tolerance vs the f32 reference.
    assert jnp.allclose(out, ref, atol=5e-2, rtol=5e-2), (
        f"max diff {jnp.max(jnp.abs(out - ref))}")

    # Larger, non-multiple batch: exercises the multi-step batch grid,
    # resident weights, and the partial last block (no pad/slice round-trip).
    key, kx2 = jax.random.split(key)
    batch2 = 2050
    x2 = jax.random.normal(kx2, (batch2, input_size), jnp.float32)
    out2 = jax.block_until_ready(fraud_nn_forward(x2, params, tile_b=512))
    ref2 = _reference_forward(x2, params)
    assert out2.shape == (batch2, 2)
    assert jnp.allclose(out2, ref2, atol=5e-2, rtol=5e-2), (
        f"max diff {jnp.max(jnp.abs(out2 - ref2))}")

    print("KERNEL_OK")
</pallas_src>

<mosaic_0001>
module attributes {stable_mosaic.version = 11 : i64} {
  func.func @_fraud_mlp_kernel(%arg0: i32, %arg1: memref<29x8xbf16, #tpu.memory_space<vmem>>, %arg2: memref<64x29xbf16, #tpu.memory_space<vmem>>, %arg3: memref<64x1xf32, #tpu.memory_space<vmem>>, %arg4: memref<32x64xbf16, #tpu.memory_space<vmem>>, %arg5: memref<32x1xf32, #tpu.memory_space<vmem>>, %arg6: memref<16x32xbf16, #tpu.memory_space<vmem>>, %arg7: memref<16x1xf32, #tpu.memory_space<vmem>>, %arg8: memref<2x16xbf16, #tpu.memory_space<vmem>>, %arg9: memref<2x1xf32, #tpu.memory_space<vmem>>, %arg10: memref<2x8xf32, #tpu.memory_space<vmem>>) attributes {dimension_semantics = [#tpu.dimension_semantics<parallel>], iteration_bounds = array<i64: 1>, scalar_prefetch = 0 : i64, scratch_operands = 0 : i64, tpu.core_type = #tpu.core_type<tc>, window_params = [{transform_indices = @transform_0, window_bounds = array<i64: 29, 8>}, {pipeline_mode = #tpu.pipeline_mode<synchronous>, transform_indices = @transform_1, window_bounds = array<i64: 64, 29>}, {pipeline_mode = #tpu.pipeline_mode<synchronous>, transform_indices = @transform_2, window_bounds = array<i64: 64, 1>}, {pipeline_mode = #tpu.pipeline_mode<synchronous>, transform_indices = @transform_3, window_bounds = array<i64: 32, 64>}, {pipeline_mode = #tpu.pipeline_mode<synchronous>, transform_indices = @transform_4, window_bounds = array<i64: 32, 1>}, {pipeline_mode = #tpu.pipeline_mode<synchronous>, transform_indices = @transform_5, window_bounds = array<i64: 16, 32>}, {pipeline_mode = #tpu.pipeline_mode<synchronous>, transform_indices = @transform_6, window_bounds = array<i64: 16, 1>}, {pipeline_mode = #tpu.pipeline_mode<synchronous>, transform_indices = @transform_7, window_bounds = array<i64: 2, 16>}, {pipeline_mode = #tpu.pipeline_mode<synchronous>, transform_indices = @transform_8, window_bounds = array<i64: 2, 1>}, {transform_indices = @transform_9, window_bounds = array<i64: 2, 8>}]} {
    %c0 = arith.constant 0 : index
    %c0_0 = arith.constant 0 : index
    %0 = vector.load %arg1[%c0, %c0_0] : memref<29x8xbf16, #tpu.memory_space<vmem>>, vector<29x8xbf16>
    %c0_1 = arith.constant 0 : index
    %c0_2 = arith.constant 0 : index
    %1 = vector.load %arg2[%c0_1, %c0_2] : memref<64x29xbf16, #tpu.memory_space<vmem>>, vector<64x29xbf16>
    %cst = arith.constant dense<0.000000e+00> : vector<64x8xf32>
    %2 = tpu.matmul %1, %0, %cst {dimension_numbers = #tpu.dot_dimension_numbers<[1], [0], [0], [1], [0, 0, 1, 1], [], []>} : vector<64x29xbf16>, vector<29x8xbf16>, vector<64x8xf32> -> vector<64x8xf32>
    %c0_3 = arith.constant 0 : index
    %c0_4 = arith.constant 0 : index
    %3 = vector.load %arg3[%c0_3, %c0_4] : memref<64x1xf32, #tpu.memory_space<vmem>>, vector<64x1xf32>
    %4 = vector.broadcast %3 : vector<64x1xf32> to vector<64x8xf32>
    %5 = arith.addf %2, %4 : vector<64x8xf32>
    %cst_5 = arith.constant 0.000000e+00 : f32
    %6 = vector.broadcast %cst_5 : f32 to vector<64x8xf32>
    %7 = arith.maximumf %5, %6 : vector<64x8xf32>
    %c0_6 = arith.constant 0 : index
    %c0_7 = arith.constant 0 : index
    %8 = vector.load %arg4[%c0_6, %c0_7] : memref<32x64xbf16, #tpu.memory_space<vmem>>, vector<32x64xbf16>
    %9 = arith.truncf %7 : vector<64x8xf32> to vector<64x8xbf16>
    %cst_8 = arith.constant dense<0.000000e+00> : vector<32x8xf32>
    %10 = tpu.matmul %8, %9, %cst_8 {dimension_numbers = #tpu.dot_dimension_numbers<[1], [0], [0], [1], [0, 0, 1, 1], [], []>} : vector<32x64xbf16>, vector<64x8xbf16>, vector<32x8xf32> -> vector<32x8xf32>
    %c0_9 = arith.constant 0 : index
    %c0_10 = arith.constant 0 : index
    %11 = vector.load %arg5[%c0_9, %c0_10] : memref<32x1xf32, #tpu.memory_space<vmem>>, vector<32x1xf32>
    %12 = vector.broadcast %11 : vector<32x1xf32> to vector<32x8xf32>
    %13 = arith.addf %10, %12 : vector<32x8xf32>
    %cst_11 = arith.constant 0.000000e+00 : f32
    %14 = vector.broadcast %cst_11 : f32 to vector<32x8xf32>
    %15 = arith.maximumf %13, %14 : vector<32x8xf32>
    %c0_12 = arith.constant 0 : index
    %c0_13 = arith.constant 0 : index
    %16 = vector.load %arg6[%c0_12, %c0_13] : memref<16x32xbf16, #tpu.memory_space<vmem>>, vector<16x32xbf16>
    %17 = arith.truncf %15 : vector<32x8xf32> to vector<32x8xbf16>
    %cst_14 = arith.constant dense<0.000000e+00> : vector<16x8xf32>
    %18 = tpu.matmul %16, %17, %cst_14 {dimension_numbers = #tpu.dot_dimension_numbers<[1], [0], [0], [1], [0, 0, 1, 1], [], []>} : vector<16x32xbf16>, vector<32x8xbf16>, vector<16x8xf32> -> vector<16x8xf32>
    %c0_15 = arith.constant 0 : index
    %c0_16 = arith.constant 0 : index
    %19 = vector.load %arg7[%c0_15, %c0_16] : memref<16x1xf32, #tpu.memory_space<vmem>>, vector<16x1xf32>
    %20 = vector.broadcast %19 : vector<16x1xf32> to vector<16x8xf32>
    %21 = arith.addf %18, %20 : vector<16x8xf32>
    %cst_17 = arith.constant 0.000000e+00 : f32
    %22 = vector.broadcast %cst_17 : f32 to vector<16x8xf32>
    %23 = arith.maximumf %21, %22 : vector<16x8xf32>
    %c0_18 = arith.constant 0 : index
    %c0_19 = arith.constant 0 : index
    %24 = vector.load %arg8[%c0_18, %c0_19] : memref<2x16xbf16, #tpu.memory_space<vmem>>, vector<2x16xbf16>
    %25 = arith.truncf %23 : vector<16x8xf32> to vector<16x8xbf16>
    %cst_20 = arith.constant dense<0.000000e+00> : vector<2x8xf32>
    %26 = tpu.matmul %24, %25, %cst_20 {dimension_numbers = #tpu.dot_dimension_numbers<[1], [0], [0], [1], [0, 0, 1, 1], [], []>} : vector<2x16xbf16>, vector<16x8xbf16>, vector<2x8xf32> -> vector<2x8xf32>
    %c0_21 = arith.constant 0 : index
    %c0_22 = arith.constant 0 : index
    %27 = vector.load %arg9[%c0_21, %c0_22] : memref<2x1xf32, #tpu.memory_space<vmem>>, vector<2x1xf32>
    %28 = vector.broadcast %27 : vector<2x1xf32> to vector<2x8xf32>
    %29 = arith.addf %26, %28 : vector<2x8xf32>
    %c0_23 = arith.constant 0 : index
    %c0_24 = arith.constant 0 : index
    %30 = vector.load %arg10[%c0_23, %c0_24] : memref<2x8xf32, #tpu.memory_space<vmem>>, vector<2x8xf32>
    tpu.vector_store %arg10[%c0_23, %c0_24], %29 {strides = array<i32>} : memref<2x8xf32, #tpu.memory_space<vmem>>, vector<2x8xf32>,
    return
  }
  func.func @transform_0(%arg0: i32) -> (i32, i32) {
    %c0_i32 = arith.constant 0 : i32
    %c0_i32_0 = arith.constant 0 : i32
    return %c0_i32, %arg0 : i32, i32
  }
  func.func @transform_1(%arg0: i32) -> (i32, i32) {
    %c0_i32 = arith.constant 0 : i32
    %c0_i32_0 = arith.constant 0 : i32
    %c0_i32_1 = arith.constant 0 : i32
    return %c0_i32, %c0_i32_0 : i32, i32
  }
  func.func @transform_2(%arg0: i32) -> (i32, i32) {
    %c0_i32 = arith.constant 0 : i32
    %c0_i32_0 = arith.constant 0 : i32
    %c0_i32_1 = arith.constant 0 : i32
    return %c0_i32, %c0_i32_0 : i32, i32
  }
  func.func @transform_3(%arg0: i32) -> (i32, i32) {
    %c0_i32 = arith.constant 0 : i32
    %c0_i32_0 = arith.constant 0 : i32
    %c0_i32_1 = arith.constant 0 : i32
    return %c0_i32, %c0_i32_0 : i32, i32
  }
  func.func @transform_4(%arg0: i32) -> (i32, i32) {
    %c0_i32 = arith.constant 0 : i32
    %c0_i32_0 = arith.constant 0 : i32
    %c0_i32_1 = arith.constant 0 : i32
    return %c0_i32, %c0_i32_0 : i32, i32
  }
  func.func @transform_5(%arg0: i32) -> (i32, i32) {
    %c0_i32 = arith.constant 0 : i32
    %c0_i32_0 = arith.constant 0 : i32
    %c0_i32_1 = arith.constant 0 : i32
    return %c0_i32, %c0_i32_0 : i32, i32
  }
  func.func @transform_6(%arg0: i32) -> (i32, i32) {
    %c0_i32 = arith.constant 0 : i32
    %c0_i32_0 = arith.constant 0 : i32
    %c0_i32_1 = arith.constant 0 : i32
    return %c0_i32, %c0_i32_0 : i32, i32
  }
  func.func @transform_7(%arg0: i32) -> (i32, i32) {
    %c0_i32 = arith.constant 0 : i32
    %c0_i32_0 = arith.constant 0 : i32
    %c0_i32_1 = arith.constant 0 : i32
    return %c0_i32, %c0_i32_0 : i32, i32
  }
  func.func @transform_8(%arg0: i32) -> (i32, i32) {
    %c0_i32 = arith.constant 0 : i32
    %c0_i32_0 = arith.constant 0 : i32
    %c0_i32_1 = arith.constant 0 : i32
    return %c0_i32, %c0_i32_0 : i32, i32
  }
  func.func @transform_9(%arg0: i32) -> (i32, i32) {
    %c0_i32 = arith.constant 0 : i32
    %c0_i32_0 = arith.constant 0 : i32
    return %c0_i32, %arg0 : i32, i32
  }
}

</mosaic_0001>

<llo_original>
// kernel: tpu_custom_call.1
$region0: #{tpu_custom_call.1}
  #allocation0 [shape = 'u32[]', space=smem, size = 0x4, offset = 0x4, fixed_abs, tag = 'smem constant byte address 0x4 - core index']
  #allocation1 [shape = 'u32[144,128]{1,0:T(1,128)}', space=vmem, size = 0x12000, scoped, tag = 'internal scratch']
  %s0 = inlined_call_operand.vmem [shape: bf16[29,8], index: 0, kind: input, shape index: {}]
  %s1 = inlined_call_operand.vmem [shape: bf16[64,29], index: 1, kind: input, shape index: {}]
  %s2 = inlined_call_operand.vmem [shape: f32[64,1], index: 2, kind: input, shape index: {}]
  %s3 = inlined_call_operand.vmem [shape: bf16[32,64], index: 3, kind: input, shape index: {}]
  %s4 = inlined_call_operand.vmem [shape: f32[32,1], index: 4, kind: input, shape index: {}]
  %s5 = inlined_call_operand.vmem [shape: bf16[16,32], index: 5, kind: input, shape index: {}]
  %s6 = inlined_call_operand.vmem [shape: f32[16,1], index: 6, kind: input, shape index: {}]
  %s7 = inlined_call_operand.vmem [shape: bf16[2,16], index: 7, kind: input, shape index: {}]
  %s8 = inlined_call_operand.vmem [shape: f32[2,1], index: 8, kind: input, shape index: {}]
  %s9 = inlined_call_operand.hbm [shape: f32[2,8], index: 9, kind: output, shape index: {}]
  %s10 = sld [smem:[#allocation0]]
  $region46: #{tpu_custom_call.1} parent=0
    _
  %s12 = ssub.s32 1, %s10
  %s13 = scalar_select 0, %s12, %s10
  $region1: #{tpu_custom_call.1} parent=0
    #allocation2 [shape = 'u8[1024]{0}', space=vmem, size = 0x400, scoped, tag = 'output window, operand 0, single buffered']
    #allocation3 [shape = 's32[1]{0}', space=sflag, size = 0x4, scoped, tag = 'scoped memory for tpu_custom_call.1']
    %14 = vsyncpa [#allocation3], 0
    // Predicated region
    $region2: #{tpu_custom_call.1} parent=1 // pred_check
      _
    $region3: #{tpu_custom_call.1} parent=1 // pred_check_branch
      %16 = sbr.rel (0) target = $region5
    $region4: #{tpu_custom_call.1} parent=1 // pred_region
      _
    $region5: #{tpu_custom_call.1} parent=1 // pred_fallthru
      _
    // Predicated region
    $region6: #{tpu_custom_call.1} parent=1 // pred_check
      _
    $region7: #{tpu_custom_call.1} parent=1 // pred_check_branch
      %18 = sbr.rel (0) target = $region9
    $region8: #{tpu_custom_call.1} parent=1 // pred_region
      _
    $region9: #{tpu_custom_call.1} parent=1 // pred_fallthru
      _
    // Predicated region
    $region10: #{tpu_custom_call.1} parent=1 // pred_check
      _
    $region11: #{tpu_custom_call.1} parent=1 // pred_check_branch
      %20 = sbr.rel (0) target = $region13
    $region12: #{tpu_custom_call.1} parent=1 // pred_region
      _
    $region13: #{tpu_custom_call.1} parent=1 // pred_fallthru
      _
    // Predicated region
    $region14: #{tpu_custom_call.1} parent=1 // pred_check
      _
    $region15: #{tpu_custom_call.1} parent=1 // pred_check_branch
      %22 = sbr.rel (0) target = $region17
    $region16: #{tpu_custom_call.1} parent=1 // pred_region
      _
    $region17: #{tpu_custom_call.1} parent=1 // pred_fallthru
      _
    // Predicated region
    $region18: #{tpu_custom_call.1} parent=1 // pred_check
      _
    $region19: #{tpu_custom_call.1} parent=1 // pred_check_branch
      %24 = sbr.rel (0) target = $region21
    $region20: #{tpu_custom_call.1} parent=1 // pred_region
      _
    $region21: #{tpu_custom_call.1} parent=1 // pred_fallthru
      _
    // Predicated region
    $region22: #{tpu_custom_call.1} parent=1 // pred_check
      _
    $region23: #{tpu_custom_call.1} parent=1 // pred_check_branch
      %26 = sbr.rel (0) target = $region25
    $region24: #{tpu_custom_call.1} parent=1 // pred_region
      _
    $region25: #{tpu_custom_call.1} parent=1 // pred_fallthru
      _
    // Predicated region
    $region26: #{tpu_custom_call.1} parent=1 // pred_check
      _
    $region27: #{tpu_custom_call.1} parent=1 // pred_check_branch
      %28 = sbr.rel (0) target = $region29
    $region28: #{tpu_custom_call.1} parent=1 // pred_region
      _
    $region29: #{tpu_custom_call.1} parent=1 // pred_fallthru
      _
    // Predicated region
    $region30: #{tpu_custom_call.1} parent=1 // pred_check
      _
    $region31: #{tpu_custom_call.1} parent=1 // pred_check_branch
      %30 = sbr.rel (0) target = $region33
    $region32: #{tpu_custom_call.1} parent=1 // pred_region
      _
    $region33: #{tpu_custom_call.1} parent=1 // pred_fallthru
      _
    // Predicated region
    $region34: #{tpu_custom_call.1} parent=1 // pred_check
      _
    $region35: #{tpu_custom_call.1} parent=1 // pred_check_branch
      %32 = sbr.rel (0) target = $region37
    $region36: #{tpu_custom_call.1} parent=1 // pred_region
      _
    $region37: #{tpu_custom_call.1} parent=1 // pred_fallthru
      _
    %v34 = vld [vmem:[%s0] sm:$0xf]
    %v35 = vld [vmem:[%s0 + $0x4] sm:$0xf]
    %v36 = vld [vmem:[%s0 + $0x8] sm:$0xf]
    %v37 = vld [vmem:[%s0 + $0xc] sm:$0x7]
    %v38 = vld [vmem:[%s1] sm:$0xf]
    %v39 = vld [vmem:[%s1 + $0x4] sm:$0xf]
    %v40 = vld [vmem:[%s1 + $0x8] sm:$0xf]
    %v41 = vld [vmem:[%s1 + $0xc] sm:$0xf]
    %v42 = vld [vmem:[%s1 + $0x10] sm:$0xf]
    %v43 = vld [vmem:[%s1 + $0x14] sm:$0xf]
    %v44 = vld [vmem:[%s1 + $0x18] sm:$0xf]
    %v45 = vld [vmem:[%s1 + $0x1c] sm:$0xf]
    %v46 = vld [vmem:[%s2] sm:$0xff]
    %v47 = vld [vmem:[%s2 + $0x8] sm:$0xff]
    %v48 = vld [vmem:[%s2 + $0x10] sm:$0xff]
    %v49 = vld [vmem:[%s2 + $0x18] sm:$0xff]
    %v50 = vld [vmem:[%s2 + $0x20] sm:$0xff]
    %v51 = vld [vmem:[%s2 + $0x28] sm:$0xff]
    %v52 = vld [vmem:[%s2 + $0x30] sm:$0xff]
    %v53 = vld [vmem:[%s2 + $0x38] sm:$0xff]
    %55 = vset.pattern.permute.xlu0 0
    %56 = vperm.xlu0 %55, %v46
    %v57 = vpop.permute.xlu0 %56
    %60 = vset.pattern.permute.xlu0 0
    %61 = vperm.xlu0 %60, %v47
    %v62 = vpop.permute.xlu0 %61
    %65 = vset.pattern.permute.xlu0 0
    %66 = vperm.xlu0 %65, %v48
    %v67 = vpop.permute.xlu0 %66
    %70 = vset.pattern.permute.xlu0 0
    %71 = vperm.xlu0 %70, %v49
    %v72 = vpop.permute.xlu0 %71
    %75 = vset.pattern.permute.xlu0 0
    %76 = vperm.xlu0 %75, %v50
    %v77 = vpop.permute.xlu0 %76
    %80 = vset.pattern.permute.xlu0 0
    %81 = vperm.xlu0 %80, %v51
    %v82 = vpop.permute.xlu0 %81
    %85 = vset.pattern.permute.xlu0 0
    %86 = vperm.xlu0 %85, %v52
    %v87 = vpop.permute.xlu0 %86
    %90 = vset.pattern.permute.xlu0 0
    %91 = vperm.xlu0 %90, %v53
    %v92 = vpop.permute.xlu0 %91
    %v102 = vunpack.c.l.b16 %v38
    %v103 = vunpack.c.l.b16 %v39
    %v104 = vunpack.c.l.b16 %v40
    %v105 = vunpack.c.l.b16 %v41
    %v106 = vunpack.c.l.b16 %v42
    %v107 = vunpack.c.l.b16 %v43
    %v108 = vunpack.c.l.b16 %v44
    %v109 = vunpack.c.l.b16 %v45
    %v110 = vpack.c.b16 %v103, %v102
    %v111 = vpack.c.b16 %v105, %v104
    %v112 = vpack.c.b16 %v107, %v106
    %v113 = vpack.c.b16 %v109, %v108
    %v118 = vunpack.c.l.b16 %v34
    %v119 = vunpack.c.l.b16 %v35
    %v120 = vunpack.c.l.b16 %v36
    %v121 = vunpack.c.l.b16 %v37
    %v122 = vpack.c.b16 %v119, %v118
    %v123 = vpack.c.b16 %v121, %v120
    %vm125 = vcmask 236544
    %v127 = vsel %vm125, %v110, 0
    %v130 = vsel %vm125, %v111, 0
    %v133 = vsel %vm125, %v112, 0
    %v136 = vsel %vm125, %v113, 0
    %vm138 = vcmask 1045504
    %vm139 = vcmask 1046528
    %v140 = vsel %vm138, 4294967295, 65535
    %v141 = vsel %vm139, %v140, 0
    %v143 = vand.u32 %v123, %v141
    %145 = vmatprep.subr.bf16.mxu0 0
    %146 = vmatpush1.bf16.msra.mxu0 %v122
    %147 = vmatprep.subr.bf16.mxu0 0
    %148 = vmatpush1.bf16.msra.mxu0 %v143
    %149 = vmatprep.subr.bf16.mxu0 0
    %150 = vmatpush1.bf16.msra.mxu0 0
    %151 = vmatprep.subr.bf16.mxu0 0
    %152 = vmatpush1.bf16.msra.mxu0 0
    %153 = vmatprep.subr.bf16.mxu0 0
    %154 = vmatpush1.bf16.msra.mxu0 0
    %155 = vmatprep.subr.bf16.mxu0 0
    %156 = vmatpush1.bf16.msra.mxu0 0
    %157 = vmatprep.subr.bf16.mxu0 0
    %158 = vmatpush1.bf16.msra.mxu0 0
    %159 = vmatprep.subr.bf16.mxu0 0
    %160 = vmatpush1.bf16.msra.mxu0 0
    %161 = vmatprep.subr.bf16.mxu0 0
    %162 = vmatpush1.bf16.msra.mxu0 0
    %163 = vmatprep.subr.bf16.mxu0 0
    %164 = vmatpush1.bf16.msra.mxu0 0
    %165 = vmatprep.subr.bf16.mxu0 0
    %166 = vmatpush1.bf16.msra.mxu0 0
    %167 = vmatprep.subr.bf16.mxu0 0
    %168 = vmatpush1.bf16.msra.mxu0 0
    %169 = vmatprep.subr.bf16.mxu0 0
    %170 = vmatpush1.bf16.msra.mxu0 0
    %171 = vmatprep.subr.bf16.mxu0 0
    %172 = vmatpush1.bf16.msra.mxu0 0
    %173 = vmatprep.subr.bf16.mxu0 0
    %174 = vmatpush1.bf16.msra.mxu0 0
    %175 = vmatprep.subr.bf16.mxu0 0
    %176 = vmatpush1.bf16.msra.mxu0 0
    %177 = vmatprep.mubr.bf16.mxu0 0
    %178 = vmatmul.mubr.bf16.gmra.mrb[0].mxu0 %v127
    %v179 = vpop.f32.mrb[0].mxu0
    %v180 = vadd.f32 %v57, %v179
    %v181 = vpop.f32.mrb[0].mxu0
    %v182 = vpop.f32.mrb[0].mxu0
    %v183 = vadd.f32 %v62, %v182
    %v184 = vpop.f32.mrb[0].mxu0
    %185 = vmatprep.mubr.bf16.mxu0 0
    %186 = vmatmul.mubr.bf16.gmra.mrb[0].mxu0 %v130
    %v187 = vpop.f32.mrb[0].mxu0
    %v188 = vadd.f32 %v67, %v187
    %v189 = vpop.f32.mrb[0].mxu0
    %v190 = vpop.f32.mrb[0].mxu0
    %v191 = vadd.f32 %v72, %v190
    %v192 = vpop.f32.mrb[0].mxu0
    %193 = vmatprep.mubr.bf16.mxu0 0
    %194 = vmatmul.mubr.bf16.gmra.mrb[0].mxu0 %v133
    %v195 = vpop.f32.mrb[0].mxu0
    %v196 = vadd.f32 %v77, %v195
    %v197 = vpop.f32.mrb[0].mxu0
    %v198 = vpop.f32.mrb[0].mxu0
    %v199 = vadd.f32 %v82, %v198
    %v200 = vpop.f32.mrb[0].mxu0
    %201 = vmatprep.mubr.bf16.mxu0 0
    %202 = vmatmul.mubr.bf16.gmra.mrb[0].mxu0 %v136
    %v203 = vpop.f32.mrb[0].mxu0
    %v204 = vadd.f32 %v87, %v203
    %v205 = vpop.f32.mrb[0].mxu0
    %v206 = vpop.f32.mrb[0].mxu0
    %v207 = vadd.f32 %v92, %v206
    %v208 = vpop.f32.mrb[0].mxu0
    %209 = vdwg.mxu0
    %v210 = vmax.f32 %v180, 0.0
    %v211 = vmax.f32 %v183, 0.0
    %v212 = vmax.f32 %v188, 0.0
    %v213 = vmax.f32 %v191, 0.0
    %v214 = vmax.f32 %v196, 0.0
    %v215 = vmax.f32 %v199, 0.0
    %v216 = vmax.f32 %v204, 0.0
    %v217 = vmax.f32 %v207, 0.0
    %v218 = vld [vmem:[%s3] sm:$0xf]
    %v219 = vld [vmem:[%s3 + $0x4] sm:$0xf]
    %v220 = vld [vmem:[%s3 + $0x8] sm:$0xf]
    %v221 = vld [vmem:[%s3 + $0xc] sm:$0xf]
    %v222 = vpack.c.bf16 %v211, %v210
    %v223 = vpack.c.bf16 %v213, %v212
    %v224 = vpack.c.bf16 %v215, %v214
    %v225 = vpack.c.bf16 %v217, %v216
    %v226 = vld [vmem:[%s4] sm:$0xff]
    %v227 = vld [vmem:[%s4 + $0x8] sm:$0xff]
    %v228 = vld [vmem:[%s4 + $0x10] sm:$0xff]
    %v229 = vld [vmem:[%s4 + $0x18] sm:$0xff]
    %231 = vset.pattern.permute.xlu0 0
    %232 = vperm.xlu0 %231, %v226
    %v233 = vpop.permute.xlu0 %232
    %236 = vset.pattern.permute.xlu0 0
    %237 = vperm.xlu0 %236, %v227
    %v238 = vpop.permute.xlu0 %237
    %241 = vset.pattern.permute.xlu0 0
    %242 = vperm.xlu0 %241, %v228
    %v243 = vpop.permute.xlu0 %242
    %246 = vset.pattern.permute.xlu0 0
    %247 = vperm.xlu0 %246, %v229
    %v248 = vpop.permute.xlu0 %247
    %v254 = vunpack.c.l.b16 %v218
    %v255 = vunpack.c.l.b16 %v219
    %v256 = vunpack.c.l.b16 %v220
    %v257 = vunpack.c.l.b16 %v221
    %v258 = vpack.c.b16 %v255, %v254
    %v259 = vpack.c.b16 %v257, %v256
    %vm260 = vcmask 523264
    %v262 = vsel %vm260, %v258, 0
    %v265 = vsel %vm260, %v259, 0
    %267 = vmatprep.subr.bf16.mxu0 0
    %268 = vmatpush1.bf16.msra.mxu0 %v222
    %269 = vmatprep.subr.bf16.mxu0 0
    %270 = vmatpush1.bf16.msra.mxu0 %v223
    %271 = vmatprep.subr.bf16.mxu0 0
    %272 = vmatpush1.bf16.msra.mxu0 %v224
    %273 = vmatprep.subr.bf16.mxu0 0
    %274 = vmatpush1.bf16.msra.mxu0 %v225
    %275 = vmatprep.subr.bf16.mxu0 0
    %276 = vmatpush1.bf16.msra.mxu0 0
    %277 = vmatprep.subr.bf16.mxu0 0
    %278 = vmatpush1.bf16.msra.mxu0 0
    %279 = vmatprep.subr.bf16.mxu0 0
    %280 = vmatpush1.bf16.msra.mxu0 0
    %281 = vmatprep.subr.bf16.mxu0 0
    %282 = vmatpush1.bf16.msra.mxu0 0
    %283 = vmatprep.subr.bf16.mxu0 0
    %284 = vmatpush1.bf16.msra.mxu0 0
    %285 = vmatprep.subr.bf16.mxu0 0
    %286 = vmatpush1.bf16.msra.mxu0 0
    %287 = vmatprep.subr.bf16.mxu0 0
    %288 = vmatpush1.bf16.msra.mxu0 0
    %289 = vmatprep.subr.bf16.mxu0 0
    %290 = vmatpush1.bf16.msra.mxu0 0
    %291 = vmatprep.subr.bf16.mxu0 0
    %292 = vmatpush1.bf16.msra.mxu0 0
    %293 = vmatprep.subr.bf16.mxu0 0
    %294 = vmatpush1.bf16.msra.mxu0 0
    %295 = vmatprep.subr.bf16.mxu0 0
    %296 = vmatpush1.bf16.msra.mxu0 0
    %297 = vmatprep.subr.bf16.mxu0 0
    %298 = vmatpush1.bf16.msra.mxu0 0
    %299 = vmatprep.mubr.bf16.mxu0 0
    %300 = vmatmul.mubr.bf16.gmra.mrb[0].mxu0 %v262
    %v301 = vpop.f32.mrb[0].mxu0
    %v302 = vadd.f32 %v233, %v301
    %v303 = vpop.f32.mrb[0].mxu0
    %v304 = vpop.f32.mrb[0].mxu0
    %v305 = vadd.f32 %v238, %v304
    %v306 = vpop.f32.mrb[0].mxu0
    %307 = vmatprep.mubr.bf16.mxu0 0
    %308 = vmatmul.mubr.bf16.gmra.mrb[0].mxu0 %v265
    %v309 = vpop.f32.mrb[0].mxu0
    %v310 = vadd.f32 %v243, %v309
    %v311 = vpop.f32.mrb[0].mxu0
    %v312 = vpop.f32.mrb[0].mxu0
    %v313 = vadd.f32 %v248, %v312
    %v314 = vpop.f32.mrb[0].mxu0
    %315 = vdwg.mxu0
    %v316 = vmax.f32 %v302, 0.0
    %v317 = vmax.f32 %v305, 0.0
    %v318 = vmax.f32 %v310, 0.0
    %v319 = vmax.f32 %v313, 0.0
    %v320 = vld [vmem:[%s5] sm:$0xf]
    %v321 = vld [vmem:[%s5 + $0x4] sm:$0xf]
    %v322 = vpack.c.bf16 %v317, %v316
    %v323 = vpack.c.bf16 %v319, %v318
    %v324 = vld [vmem:[%s6] sm:$0xff]
    %v325 = vld [vmem:[%s6 + $0x8] sm:$0xff]
    %327 = vset.pattern.permute.xlu0 0
    %328 = vperm.xlu0 %327, %v324
    %v329 = vpop.permute.xlu0 %328
    %332 = vset.pattern.permute.xlu0 0
    %333 = vperm.xlu0 %332, %v325
    %v334 = vpop.permute.xlu0 %333
    %v338 = vunpack.c.l.b16 %v320
    %v339 = vunpack.c.l.b16 %v321
    %v340 = vpack.c.b16 %v339, %v338
    %vm341 = vcmask 261120
    %v343 = vsel %vm341, %v340, 0
    %345 = vmatprep.subr.bf16.mxu0 0
    %346 = vmatpush1.bf16.msra.mxu0 %v322
    %347 = vmatprep.subr.bf16.mxu0 0
    %348 = vmatpush1.bf16.msra.mxu0 %v323
    %349 = vmatprep.subr.bf16.mxu0 0
    %350 = vmatpush1.bf16.msra.mxu0 0
    %351 = vmatprep.subr.bf16.mxu0 0
    %352 = vmatpush1.bf16.msra.mxu0 0
    %353 = vmatprep.subr.bf16.mxu0 0
    %354 = vmatpush1.bf16.msra.mxu0 0
    %355 = vmatprep.subr.bf16.mxu0 0
    %356 = vmatpush1.bf16.msra.mxu0 0
    %357 = vmatprep.subr.bf16.mxu0 0
    %358 = vmatpush1.bf16.msra.mxu0 0
    %359 = vmatprep.subr.bf16.mxu0 0
    %360 = vmatpush1.bf16.msra.mxu0 0
    %361 = vmatprep.subr.bf16.mxu0 0
    %362 = vmatpush1.bf16.msra.mxu0 0
    %363 = vmatprep.subr.bf16.mxu0 0
    %364 = vmatpush1.bf16.msra.mxu0 0
    %365 = vmatprep.subr.bf16.mxu0 0
    %366 = vmatpush1.bf16.msra.mxu0 0
    %367 = vmatprep.subr.bf16.mxu0 0
    %368 = vmatpush1.bf16.msra.mxu0 0
    %369 = vmatprep.subr.bf16.mxu0 0
    %370 = vmatpush1.bf16.msra.mxu0 0
    %371 = vmatprep.subr.bf16.mxu0 0
    %372 = vmatpush1.bf16.msra.mxu0 0
    %373 = vmatprep.subr.bf16.mxu0 0
    %374 = vmatpush1.bf16.msra.mxu0 0
    %375 = vmatprep.subr.bf16.mxu0 0
    %376 = vmatpush1.bf16.msra.mxu0 0
    %377 = vmatprep.mubr.bf16.mxu0 0
    %378 = vmatmul.mubr.bf16.gmra.mrb[0].mxu0 %v343
    %v379 = vpop.f32.mrb[0].mxu0
    %v380 = vadd.f32 %v329, %v379
    %v381 = vpop.f32.mrb[0].mxu0
    %v382 = vpop.f32.mrb[0].mxu0
    %v383 = vadd.f32 %v334, %v382
    %v384 = vpop.f32.mrb[0].mxu0
    %385 = vdwg.mxu0
    %v386 = vmax.f32 %v380, 0.0
    %v387 = vmax.f32 %v383, 0.0
    %v388 = vld [vmem:[%s7] sm:$0x1]
    %v389 = vpack.c.bf16 %v387, %v386
    %v390 = vld [vmem:[%s8] sm:$0x3]
    %392 = vset.pattern.permute.xlu0 0
    %393 = vperm.xlu0 %392, %v390
    %v394 = vpop.permute.xlu0 %393
    %vm396 = vcmask 130048
    %v398 = vsel %vm396, %v388, 0
    %400 = vmatprep.subr.bf16.mxu0 0
    %401 = vmatpush1.bf16.msra.mxu0 %v389
    %402 = vmatprep.subr.bf16.mxu0 0
    %403 = vmatpush1.bf16.msra.mxu0 0
    %404 = vmatprep.subr.bf16.mxu0 0
    %405 = vmatpush1.bf16.msra.mxu0 0
    %406 = vmatprep.subr.bf16.mxu0 0
    %407 = vmatpush1.bf16.msra.mxu0 0
    %408 = vmatprep.subr.bf16.mxu0 0
    %409 = vmatpush1.bf16.msra.mxu0 0
    %410 = vmatprep.subr.bf16.mxu0 0
    %411 = vmatpush1.bf16.msra.mxu0 0
    %412 = vmatprep.subr.bf16.mxu0 0
    %413 = vmatpush1.bf16.msra.mxu0 0
    %414 = vmatprep.subr.bf16.mxu0 0
    %415 = vmatpush1.bf16.msra.mxu0 0
    %416 = vmatprep.subr.bf16.mxu0 0
    %417 = vmatpush1.bf16.msra.mxu0 0
    %418 = vmatprep.subr.bf16.mxu0 0
    %419 = vmatpush1.bf16.msra.mxu0 0
    %420 = vmatprep.subr.bf16.mxu0 0
    %421 = vmatpush1.bf16.msra.mxu0 0
    %422 = vmatprep.subr.bf16.mxu0 0
    %423 = vmatpush1.bf16.msra.mxu0 0
    %424 = vmatprep.subr.bf16.mxu0 0
    %425 = vmatpush1.bf16.msra.mxu0 0
    %426 = vmatprep.subr.bf16.mxu0 0
    %427 = vmatpush1.bf16.msra.mxu0 0
    %428 = vmatprep.subr.bf16.mxu0 0
    %429 = vmatpush1.bf16.msra.mxu0 0
    %430 = vmatprep.subr.bf16.mxu0 0
    %431 = vmatpush1.bf16.msra.mxu0 0
    %432 = vmatprep.mubr.bf16.mxu0 0
    %433 = vmatmul.mubr.bf16.gmra.mrb[0].mxu0 %v398
    %v434 = vpop.f32.mrb[0].mxu0
    %v435 = vadd.f32 %v394, %v434
    %v436 = vpop.f32.mrb[0].mxu0
    %v437 = vpop.f32.mrb[0].mxu0
    %v438 = vpop.f32.mrb[0].mxu0
    %439 = vdwg.mxu0
    %vm440 = vcmask 58368
    %441 = vst.msk [vmem:[#allocation2] sm:$0x3] %vm440, %v435
    // Predicated region
    $region38: #{tpu_custom_call.1} parent=1 // pred_check
      _
    $region39: #{tpu_custom_call.1} parent=1 // pred_check_branch
      %443 = sbr.rel (0) target = $region41
    $region40: #{tpu_custom_call.1} parent=1 // pred_region
      %s445 = ssub.s32 32, 32
      %446 = vsyncadd [#allocation3], %s445
      %s448 = sshll.u32 [#allocation2], 4
      %s449 = int_to_ptr.vmem [resolvable:$true] %s448
      %451 = dma.vmem_to_hbm [thread:$0]  %s449, 32, %s9, [#allocation3]
    $region41: #{tpu_custom_call.1} parent=1 // pred_fallthru
      _
    // Predicated region
    $region42: #{tpu_custom_call.1} parent=1 // pred_check
      _
    $region43: #{tpu_custom_call.1} parent=1 // pred_check_branch
      %453 = sbr.rel (0) target = $region45
    $region44: #{tpu_custom_call.1} parent=1 // pred_region
      %454 = dma.done [#allocation3], 32
    $region45: #{tpu_custom_call.1} parent=1 // pred_fallthru
      _
    %455 = vsyncpa [#allocation3], 1

</llo_original>
